<compile_context>
chip_gen: v7x
topology: tpu7x:2x2x1
jax: 0.10.0
libtpu: 0.0.40
codegen_flags: <defaults>
</compile_context>

<pallas_src>
import functools

import jax
import jax.numpy as jnp
from jax import lax
from jax.experimental import pallas as pl
from jax.experimental.pallas import tpu as pltpu


# ----------------------------------------------------------------------------
# Kernel
# ----------------------------------------------------------------------------
def _lifetime_topk_kernel(x_ref, o_ref, *, k, use_argmax, work_dtype):
    n, tf = x_ref.shape

    if k >= n:                                  # static guard: identity
        o_ref[...] = x_ref[...]
        return

    # Working copy (no-op cast when input dtype == work dtype).  Not keeping
    # the native tile live across the loop reduces vreg pressure; it is
    # re-read from VMEM after the loop for the final select.
    work0 = x_ref[...].astype(work_dtype)
    row_ids = lax.broadcasted_iota(jnp.int32, (n, tf), 0)

    # For k > n/2 it is cheaper to find the (n - k) smallest entries to drop.
    invert = (2 * k) > n
    steps = (n - k) if invert else k
    sentinel = jnp.asarray(float("inf") if invert else float("-inf"),
                           dtype=work_dtype)

    def pick(work):
        # (1, tf) row index of the per-column extreme.
        if invert:
            # Drop one of the smallest; break ties toward the HIGHEST row
            # index so the kept set equals top-k with lowest-index ties.
            ext = jnp.min(work, axis=0, keepdims=True)
            return jnp.max(jnp.where(work == ext, row_ids, -1), axis=0,
                           keepdims=True)
        if use_argmax:
            # First occurrence == lowest row index (matches lax.top_k ties).
            return jnp.argmax(work, axis=0, keepdims=True).astype(jnp.int32)
        # Fallback: two cross-sublane reductions (always lowers).
        ext = jnp.max(work, axis=0, keepdims=True)
        return jnp.min(jnp.where(work == ext, row_ids, n), axis=0,
                       keepdims=True)

    def body(_, work):
        sel = row_ids == pick(work)             # exactly one True per column
        return jnp.where(sel, sentinel, work)

    if steps <= 8:
        unroll = True        # full unroll for short dependent chains
    elif steps <= 64:
        unroll = 4           # partial unroll: cross-iteration XLU/VALU overlap
    else:
        unroll = 1
    work = lax.fori_loop(0, steps, body, work0, unroll=unroll)

    x_nat = x_ref[...]                          # re-read; not live across loop
    hit = work == sentinel                      # rows touched by the loop
    zeros = jnp.zeros_like(x_nat)
    if invert:
        o_ref[...] = jnp.where(hit, zeros, x_nat)   # hit == dropped rows
    else:
        o_ref[...] = jnp.where(hit, x_nat, zeros)   # hit == kept rows


# ----------------------------------------------------------------------------
# pallas_call builder
# ----------------------------------------------------------------------------
def _make_call(*, n, f, tf, k, in_dtype, work_dtype, use_argmax, vmem_limit):
    kernel = functools.partial(_lifetime_topk_kernel, k=k,
                               use_argmax=use_argmax, work_dtype=work_dtype)
    grid = (pl.cdiv(f, tf),)
    spec = pl.BlockSpec((n, tf), lambda j: (0, j))
    return pl.pallas_call(
        kernel,
        out_shape=jax.ShapeDtypeStruct((n, f), in_dtype),
        grid=grid,
        in_specs=[spec],
        out_specs=spec,
        compiler_params=pltpu.CompilerParams(
            dimension_semantics=("parallel",),
            vmem_limit_bytes=int(vmem_limit)),
    )


# ----------------------------------------------------------------------------
# One-time, cached AOT lowerability probe (never executes, never touches the
# user's tensors).
# ----------------------------------------------------------------------------
@functools.lru_cache(maxsize=None)
def _compiles(in_dtype_name, work_dtype_name, use_argmax, invert):
    n, f = 8, 128
    k = 6 if invert else 2
    try:
        call = _make_call(n=n, f=f, tf=f, k=k,
                          in_dtype=jnp.dtype(in_dtype_name),
                          work_dtype=jnp.dtype(work_dtype_name),
                          use_argmax=use_argmax,
                          vmem_limit=32 << 20)
        jax.jit(call).lower(
            jax.ShapeDtypeStruct((n, f), jnp.dtype(in_dtype_name))).compile()
        return True
    except Exception:
        return False


# ----------------------------------------------------------------------------
# Chip detection (cached)
# ----------------------------------------------------------------------------
@functools.lru_cache(maxsize=None)
def _chip_info():
    kind = ""
    try:
        kind = jax.devices()[0].device_kind.lower()
    except Exception:
        pass
    is_v7 = "v7" in kind
    has_bf16_vpu = ("v6" in kind) or is_v7       # conservative: f32 elsewhere
    vmem_cap = 0
    try:
        vmem_cap = int(pltpu.get_tpu_info().vmem_capacity_bytes)
    except Exception:
        pass
    if vmem_cap <= 0:
        vmem_cap = (64 << 20) if is_v7 else (128 << 20)
    return {"is_v7": is_v7, "multi_tc": is_v7,
            "has_bf16_vpu": has_bf16_vpu, "vmem_cap": vmem_cap}


def _round_up(v, m):
    return -(-v // m) * m


def _pick_tile(n, f, in_itemsize, work_itemsize, multi_tc, vmem_cap,
               feature_tile):
    # vreg residency: keep the loop-live set (work + row iota + temps,
    # ~3 arrays) inside ~75% of the 64 x 4 KiB vreg file so the serial
    # knockout loop does not spill its carry to VMEM.
    vreg_budget = int(0.75 * 64 * 4096)
    tf_vreg = vreg_budget // max(3 * n * work_itemsize, 1)
    # VMEM: double-buffered in+out blocks plus kernel-internal work/iota,
    # within ~1/3 of physical VMEM per TensorCore.
    per_lane = 4 * n * in_itemsize + 3 * n * work_itemsize
    tf_vmem = (vmem_cap // 3) // max(per_lane, 1)
    tf_max = max(128, (min(tf_vreg, tf_vmem, 2048) // 128) * 128)
    if feature_tile is not None:
        tf_max = max(128, (int(feature_tile) // 128) * 128)

    if f <= 128:
        return f                    # single full-dim block (always legal)
    tf = min(tf_max, _round_up(f, 128))
    if multi_tc:
        # >= 2 grid steps so both v7x TensorCores get work.
        tf = min(tf, max(128, _round_up(pl.cdiv(f, 2), 128)))
    if pl.cdiv(f, tf) == 1:
        tf = f                      # full-dim block: no overhang, always legal
    return tf


# ----------------------------------------------------------------------------
# Public wrapper
# ----------------------------------------------------------------------------
def lifetime_topk_sparsity(x, topk=5, training=True, feature_tile=None):
    """Forward pass of LifetimeTopkSparsity (training applies per-column
    top-k along the batch axis; eval mode is identity)."""
    assert x.ndim == 2, "LifetimeTopKFunction expects a 2-D input"
    if not training:
        return x

    n, f = x.shape
    k = min(int(topk), n)
    if k >= n:                      # every entry kept -> identity
        return x

    info = _chip_info()
    in_itemsize = jnp.dtype(x.dtype).itemsize
    invert = (2 * k) > n
    in_name = jnp.dtype(x.dtype).name

    # Work dtype: bf16 carry only when input is bf16 AND the chip has a bf16
    # VPU (v6e/v7x); f32 otherwise.  Implementation (argmax vs 2-reduction
    # fallback) chosen via the cached AOT probe.
    work_candidates = []
    if x.dtype == jnp.bfloat16 and info["has_bf16_vpu"]:
        work_candidates.append("bfloat16")
    work_candidates.append("float32")

    work_dtype, use_argmax = jnp.float32, False
    chosen = False
    for wd in work_candidates:
        for am in ([False] if invert else [True, False]):
            if _compiles(in_name, wd, am, invert):
                work_dtype, use_argmax, chosen = jnp.dtype(wd), am, True
                break
        if chosen:
            break
    work_itemsize = jnp.dtype(work_dtype).itemsize

    tf = _pick_tile(n, f, in_itemsize, work_itemsize,
                    info["multi_tc"], info["vmem_cap"], feature_tile)

    # Scoped VMEM limit: double-buffered in+out blocks + kernel-internal
    # work/iota/temps + headroom; no double counting, capped at 48 MiB on v7x.
    pipeline_bytes = 2 * 2 * n * tf * in_itemsize
    kernel_bytes = 3 * n * tf * work_itemsize
    cap = (48 << 20) if info["is_v7"] else (64 << 20)
    vmem_limit = min(max(pipeline_bytes + kernel_bytes + (4 << 20), 32 << 20),
                     cap)

    call = _make_call(n=n, f=f, tf=tf, k=k, in_dtype=x.dtype,
                      work_dtype=work_dtype, use_argmax=use_argmax,
                      vmem_limit=vmem_limit)
    return call(x)


# ----------------------------------------------------------------------------
# Pure-JAX reference of LifetimeTopKFunction.forward
# ----------------------------------------------------------------------------
def _reference(x, topk):
    n, f = x.shape
    k = min(topk, n)
    _, idx = lax.top_k(x.T, k)                       # (F, k) row indices
    mask = jnp.zeros((f, n), dtype=bool)
    mask = mask.at[jnp.arange(f)[:, None], idx].set(True).T   # (N, F)
    return jnp.where(mask, x, 0.0)


if __name__ == "__main__":
    key = jax.random.PRNGKey(0)
    k1, k2 = jax.random.split(key)

    # Case 1: N=8 lifetime entries, 128 features, topk=5 (k > N/2 -> inverted).
    N1, F1, TOPK1 = 8, 128, 5
    x1 = jax.random.normal(k1, (N1, F1), dtype=jnp.float32)
    y1 = jax.block_until_ready(lifetime_topk_sparsity(x1, topk=TOPK1,
                                                      training=True))
    assert y1.shape == x1.shape and y1.dtype == x1.dtype
    assert jnp.allclose(y1, _reference(x1, TOPK1)), "mismatch (case 1)"
    assert int(jnp.count_nonzero(y1)) == min(TOPK1, N1) * F1

    # Case 2: non-128-multiple feature dim (ragged last block), topk=3.
    N2, F2, TOPK2 = 16, 200, 3
    x2 = jax.random.normal(k2, (N2, F2), dtype=jnp.float32)
    y2 = jax.block_until_ready(lifetime_topk_sparsity(x2, topk=TOPK2,
                                                      training=True))
    assert y2.shape == x2.shape and y2.dtype == x2.dtype
    assert jnp.allclose(y2, _reference(x2, TOPK2)), "mismatch (case 2)"
    assert int(jnp.count_nonzero(y2)) == min(TOPK2, N2) * F2

    # Eval mode is identity.
    y_eval = jax.block_until_ready(lifetime_topk_sparsity(x1, topk=TOPK1,
                                                          training=False))
    assert jnp.array_equal(y_eval, x1)

    print("KERNEL_OK")
</pallas_src>

<mosaic_0001>
module attributes {stable_mosaic.version = 11 : i64} {
  func.func @_lifetime_topk_kernel(%arg0: i32, %arg1: memref<8x128xf32, #tpu.memory_space<vmem>>, %arg2: memref<8x128xf32, #tpu.memory_space<vmem>>) attributes {dimension_semantics = [#tpu.dimension_semantics<parallel>], iteration_bounds = array<i64: 1>, scalar_prefetch = 0 : i64, scratch_operands = 0 : i64, tpu.core_type = #tpu.core_type<tc>, window_params = [{transform_indices = @transform_0, window_bounds = array<i64: 8, 128>}, {transform_indices = @transform_1, window_bounds = array<i64: 8, 128>}]} {
    %c0 = arith.constant 0 : index
    %c0_0 = arith.constant 0 : index
    %0 = vector.load %arg1[%c0, %c0_0] : memref<8x128xf32, #tpu.memory_space<vmem>>, vector<8x128xf32>
    %1 = tpu.iota {dimensions = array<i32: 0>} : vector<8x128xi32>
    %cst = arith.constant 0x7F800000 : f32
    %c0_i32 = arith.constant 0 : i32
    %cst_1 = arith.constant dense<0x7F800000> : vector<128xf32>
    %2 = vector.multi_reduction <minimumf>, %0, %cst_1 [0] : vector<8x128xf32> to vector<128xf32>
    %3 = vector.shape_cast %2 : vector<128xf32> to vector<1x128xf32>
    %4 = vector.broadcast %3 : vector<1x128xf32> to vector<8x128xf32>
    %5 = arith.cmpf oeq, %0, %4 : vector<8x128xf32>
    %c-1_i32 = arith.constant -1 : i32
    %6 = vector.broadcast %c-1_i32 : i32 to vector<8x128xi32>
    %7 = arith.select %5, %1, %6 : vector<8x128xi1>, vector<8x128xi32>
    %cst_2 = arith.constant dense<-2147483648> : vector<128xi32>
    %8 = vector.multi_reduction <maxsi>, %7, %cst_2 [0] : vector<8x128xi32> to vector<128xi32>
    %9 = vector.shape_cast %8 : vector<128xi32> to vector<1x128xi32>
    %10 = vector.broadcast %9 : vector<1x128xi32> to vector<8x128xi32>
    %11 = arith.cmpi eq, %1, %10 : vector<8x128xi32>
    %12 = vector.broadcast %cst : f32 to vector<8x128xf32>
    %13 = arith.select %11, %12, %0 : vector<8x128xi1>, vector<8x128xf32>
    %c1_i32 = arith.constant 1 : i32
    %cst_3 = arith.constant dense<0x7F800000> : vector<128xf32>
    %14 = vector.multi_reduction <minimumf>, %13, %cst_3 [0] : vector<8x128xf32> to vector<128xf32>
    %15 = vector.shape_cast %14 : vector<128xf32> to vector<1x128xf32>
    %16 = vector.broadcast %15 : vector<1x128xf32> to vector<8x128xf32>
    %17 = arith.cmpf oeq, %13, %16 : vector<8x128xf32>
    %c-1_i32_4 = arith.constant -1 : i32
    %18 = vector.broadcast %c-1_i32_4 : i32 to vector<8x128xi32>
    %19 = arith.select %17, %1, %18 : vector<8x128xi1>, vector<8x128xi32>
    %cst_5 = arith.constant dense<-2147483648> : vector<128xi32>
    %20 = vector.multi_reduction <maxsi>, %19, %cst_5 [0] : vector<8x128xi32> to vector<128xi32>
    %21 = vector.shape_cast %20 : vector<128xi32> to vector<1x128xi32>
    %22 = vector.broadcast %21 : vector<1x128xi32> to vector<8x128xi32>
    %23 = arith.cmpi eq, %1, %22 : vector<8x128xi32>
    %24 = vector.broadcast %cst : f32 to vector<8x128xf32>
    %25 = arith.select %23, %24, %13 : vector<8x128xi1>, vector<8x128xf32>
    %c2_i32 = arith.constant 2 : i32
    %cst_6 = arith.constant dense<0x7F800000> : vector<128xf32>
    %26 = vector.multi_reduction <minimumf>, %25, %cst_6 [0] : vector<8x128xf32> to vector<128xf32>
    %27 = vector.shape_cast %26 : vector<128xf32> to vector<1x128xf32>
    %28 = vector.broadcast %27 : vector<1x128xf32> to vector<8x128xf32>
    %29 = arith.cmpf oeq, %25, %28 : vector<8x128xf32>
    %c-1_i32_7 = arith.constant -1 : i32
    %30 = vector.broadcast %c-1_i32_7 : i32 to vector<8x128xi32>
    %31 = arith.select %29, %1, %30 : vector<8x128xi1>, vector<8x128xi32>
    %cst_8 = arith.constant dense<-2147483648> : vector<128xi32>
    %32 = vector.multi_reduction <maxsi>, %31, %cst_8 [0] : vector<8x128xi32> to vector<128xi32>
    %33 = vector.shape_cast %32 : vector<128xi32> to vector<1x128xi32>
    %34 = vector.broadcast %33 : vector<1x128xi32> to vector<8x128xi32>
    %35 = arith.cmpi eq, %1, %34 : vector<8x128xi32>
    %36 = vector.broadcast %cst : f32 to vector<8x128xf32>
    %37 = arith.select %35, %36, %25 : vector<8x128xi1>, vector<8x128xf32>
    %c0_9 = arith.constant 0 : index
    %c0_10 = arith.constant 0 : index
    %38 = vector.load %arg1[%c0_9, %c0_10] : memref<8x128xf32, #tpu.memory_space<vmem>>, vector<8x128xf32>
    %cst_11 = arith.constant 0x7F800000 : f32
    %39 = vector.broadcast %cst_11 : f32 to vector<8x128xf32>
    %40 = arith.cmpf oeq, %37, %39 : vector<8x128xf32>
    %cst_12 = arith.constant 0.000000e+00 : f32
    %41 = vector.broadcast %cst_12 : f32 to vector<8x128xf32>
    %42 = arith.select %40, %41, %38 : vector<8x128xi1>, vector<8x128xf32>
    %c0_13 = arith.constant 0 : index
    %c0_14 = arith.constant 0 : index
    %43 = vector.load %arg2[%c0_13, %c0_14] : memref<8x128xf32, #tpu.memory_space<vmem>>, vector<8x128xf32>
    tpu.vector_store %arg2[%c0_13, %c0_14], %42 {strides = array<i32>} : memref<8x128xf32, #tpu.memory_space<vmem>>, vector<8x128xf32>,
    return
  }
  func.func @transform_0(%arg0: i32) -> (i32, i32) {
    %c0_i32 = arith.constant 0 : i32
    %c0_i32_0 = arith.constant 0 : i32
    return %c0_i32, %arg0 : i32, i32
  }
  func.func @transform_1(%arg0: i32) -> (i32, i32) {
    %c0_i32 = arith.constant 0 : i32
    %c0_i32_0 = arith.constant 0 : i32
    return %c0_i32, %arg0 : i32, i32
  }
}

</mosaic_0001>

<llo_original>
// kernel: tpu_custom_call.1
$region0: #{tpu_custom_call.1}
  #allocation0 [shape = 'u32[]', space=smem, size = 0x4, offset = 0x4, fixed_abs, tag = 'smem constant byte address 0x4 - core index']
  #allocation1 [shape = 'u32[144,128]{1,0:T(1,128)}', space=vmem, size = 0x12000, scoped, tag = 'internal scratch']
  %s0 = inlined_call_operand.hbm [shape: f32[8,128], index: 0, kind: input, shape index: {}]
  %s1 = inlined_call_operand.hbm [shape: f32[8,128], index: 1, kind: output, shape index: {}]
  %s2 = sld [smem:[#allocation0]]
  $region18: #{tpu_custom_call.1} parent=0
    _
  %s4 = ssub.s32 1, %s2
  %s5 = scalar_select 0, %s4, %s2
  $region1: #{tpu_custom_call.1} parent=0
    #allocation2 [shape = 'u8[4096]{0}', space=vmem, size = 0x1000, scoped, tag = 'input window, operand 0, single buffered']
    #allocation3 [shape = 's32[1]{0}', space=sflag, size = 0x4, scoped, tag = 'scoped memory for tpu_custom_call.1']
    #allocation4 [shape = 's32[1]{0}', space=sflag, size = 0x4, scoped, tag = 'scoped memory for tpu_custom_call.1']
    #allocation5 [shape = 'u8[4096]{0}', space=vmem, size = 0x1000, scoped, tag = 'output window, operand 0, single buffered']
    %6 = vsyncpa [#allocation3], 0
    %7 = vsyncpa [#allocation4], 0
    // Predicated region
    $region2: #{tpu_custom_call.1} parent=1 // pred_check
      _
    $region3: #{tpu_custom_call.1} parent=1 // pred_check_branch
      %9 = sbr.rel (0) target = $region5
    $region4: #{tpu_custom_call.1} parent=1 // pred_region
      %s11 = ssub.s32 128, 128
      %12 = vsyncadd [#allocation3], %s11
      %s14 = sshll.u32 [#allocation2], 4
      %s15 = int_to_ptr.vmem [resolvable:$true] %s14
      %17 = dma.hbm_to_vmem [thread:$0]  %s0, 128, %s15, [#allocation3]
    $region5: #{tpu_custom_call.1} parent=1 // pred_fallthru
      _
    // Predicated region
    $region6: #{tpu_custom_call.1} parent=1 // pred_check
      _
    $region7: #{tpu_custom_call.1} parent=1 // pred_check_branch
      %19 = sbr.rel (0) target = $region9
    $region8: #{tpu_custom_call.1} parent=1 // pred_region
      %20 = dma.done [#allocation3], 128
    $region9: #{tpu_custom_call.1} parent=1 // pred_fallthru
      _
    %v21 = vld [vmem:[#allocation2] sm:$0xff]
    %v22 = vlaneseq
    %v23 = vshrl.u32 %v22, 7
    %v24 = vrot.slane %v21, 4
    %v25 = vmin.f32 %v21, %v24
    %v26 = vrot.slane %v25, 2
    %v27 = vmin.f32 %v25, %v26
    %v28 = vrot.slane %v27, 1
    %v29 = vmin.f32 %v27, %v28
    %vm30 = vcmp.eq.f32.partialorder %v21, %v29
    %v31 = vsel %vm30, %v23, 4294967295
    %v32 = vrot.slane %v31, 4
    %vm33 = vcmp.gt.s32.totalorder %v31, %v32
    %v34 = vsel %vm33, %v31, %v32
    %v35 = vrot.slane %v34, 2
    %vm36 = vcmp.gt.s32.totalorder %v34, %v35
    %v37 = vsel %vm36, %v34, %v35
    %v38 = vrot.slane %v37, 1
    %vm39 = vcmp.gt.s32.totalorder %v37, %v38
    %v40 = vsel %vm39, %v37, %v38
    %vm41 = vcmp.eq.s32.totalorder %v23, %v40
    %v42 = vsel %vm41, inf, %v21
    %v43 = vrot.slane %v42, 4
    %v44 = vmin.f32 %v42, %v43
    %v45 = vrot.slane %v44, 2
    %v46 = vmin.f32 %v44, %v45
    %v47 = vrot.slane %v46, 1
    %v48 = vmin.f32 %v46, %v47
    %vm49 = vcmp.eq.f32.partialorder %v42, %v48
    %v50 = vsel %vm49, %v23, 4294967295
    %v51 = vrot.slane %v50, 4
    %vm52 = vcmp.gt.s32.totalorder %v50, %v51
    %v53 = vsel %vm52, %v50, %v51
    %v54 = vrot.slane %v53, 2
    %vm55 = vcmp.gt.s32.totalorder %v53, %v54
    %v56 = vsel %vm55, %v53, %v54
    %v57 = vrot.slane %v56, 1
    %vm58 = vcmp.gt.s32.totalorder %v56, %v57
    %v59 = vsel %vm58, %v56, %v57
    %vm60 = vcmp.eq.s32.totalorder %v23, %v59
    %v61 = vsel %vm60, inf, %v42
    %v62 = vrot.slane %v61, 4
    %v63 = vmin.f32 %v61, %v62
    %v64 = vrot.slane %v63, 2
    %v65 = vmin.f32 %v63, %v64
    %v66 = vrot.slane %v65, 1
    %v67 = vmin.f32 %v65, %v66
    %vm68 = vcmp.eq.f32.partialorder %v61, %v67
    %v69 = vsel %vm68, %v23, 4294967295
    %v70 = vrot.slane %v69, 4
    %vm71 = vcmp.gt.s32.totalorder %v69, %v70
    %v72 = vsel %vm71, %v69, %v70
    %v73 = vrot.slane %v72, 2
    %vm74 = vcmp.gt.s32.totalorder %v72, %v73
    %v75 = vsel %vm74, %v72, %v73
    %v76 = vrot.slane %v75, 1
    %vm77 = vcmp.gt.s32.totalorder %v75, %v76
    %v78 = vsel %vm77, %v75, %v76
    %vm79 = vcmp.eq.s32.totalorder %v23, %v78
    %v80 = vsel %vm79, inf, %v61
    %vm81 = vcmp.eq.f32.partialorder %v80, inf
    %v82 = vsel %vm81, 0.0, %v21
    %83 = vst [vmem:[#allocation5] sm:$0xff] %v82
    // Predicated region
    $region10: #{tpu_custom_call.1} parent=1 // pred_check
      _
    $region11: #{tpu_custom_call.1} parent=1 // pred_check_branch
      %85 = sbr.rel (0) target = $region13
    $region12: #{tpu_custom_call.1} parent=1 // pred_region
      %s87 = ssub.s32 128, 128
      %88 = vsyncadd [#allocation4], %s87
      %s90 = sshll.u32 [#allocation5], 4
      %s91 = int_to_ptr.vmem [resolvable:$true] %s90
      %93 = dma.vmem_to_hbm [thread:$0]  %s91, 128, %s1, [#allocation4]
    $region13: #{tpu_custom_call.1} parent=1 // pred_fallthru
      _
    // Predicated region
    $region14: #{tpu_custom_call.1} parent=1 // pred_check
      _
    $region15: #{tpu_custom_call.1} parent=1 // pred_check_branch
      %95 = sbr.rel (0) target = $region17
    $region16: #{tpu_custom_call.1} parent=1 // pred_region
      %96 = dma.done [#allocation4], 128
    $region17: #{tpu_custom_call.1} parent=1 // pred_fallthru
      _
    %97 = vsyncpa [#allocation3], 1
    %98 = vsyncpa [#allocation4], 1

</llo_original>
